<compile_context>
chip_gen: v6e
topology: v6e:2x2x1
jax: 0.10.0
libtpu: 0.0.40
codegen_flags: <defaults>
</compile_context>

<pallas_src>
import functools
import math

import numpy as np
import jax
import jax.numpy as jnp
from jax.experimental import pallas as pl
from jax.experimental.pallas import tpu as pltpu


# ---------------------------------------------------------------------------
# Hardware-aware budgets
# ---------------------------------------------------------------------------
def _vmem_capacity_bytes():
    """Physical VMEM per core (128 MiB on v5e/v6e, 64 MiB on v7x)."""
    try:
        info = pltpu.get_tpu_info()
        cap = int(getattr(info, "vmem_capacity_bytes", 0) or 0)
        if cap > 0:
            return cap
    except Exception:
        pass
    return 64 * 1024 * 1024  # conservative (v7x) if the query is unavailable


@functools.lru_cache(maxsize=None)
def _budgets():
    cap = _vmem_capacity_bytes()
    block_budget = int(cap * 0.40)   # budget for blocked data tiles (+ headroom)
    vmem_limit = int(cap * 0.80)     # scoped VMEM limit handed to Mosaic
    # v7x exposes ~64 MiB/TC and has 2 TensorCores per chip; v5e/v6e have one.
    two_cores = cap <= 80 * 1024 * 1024
    return block_budget, vmem_limit, two_cores


def _cdiv(a, b):
    return -(-a // b)


# ---------------------------------------------------------------------------
# Kernels
# ---------------------------------------------------------------------------
def _fast_kernel_factored(x_ref, c_ref, o_ref, *, s_h, w_out, cdtype):
    # x_ref: (Bm, W)   c_ref: (W, W_out)   o_ref: (Bm, s_h*W_out)
    # Row replication is s_h lane-aligned stores, not extra MXU FLOPs.
    z = jnp.dot(x_ref[...].astype(cdtype), c_ref[...],
                preferred_element_type=jnp.float32).astype(o_ref.dtype)
    if s_h == 1:
        o_ref[...] = z
    else:
        for r in range(s_h):                       # W_out % 128 == 0 → aligned
            o_ref[:, r * w_out:(r + 1) * w_out] = z


def _fast_kernel_tiled(x_ref, c2_ref, o_ref, *, cdtype):
    # x_ref: (Bm, W)   c2_ref: (W, s_h*W_out)   o_ref: (Bm, s_h*W_out)
    acc = jnp.dot(x_ref[...].astype(cdtype), c2_ref[...],
                  preferred_element_type=jnp.float32)
    o_ref[...] = acc.astype(o_ref.dtype)


def _general_kernel(x_ref, r_ref, c_ref, o_ref, *, bc, cdtype):
    # x_ref: (Bc, H, W)  r_ref: (H_out, H)  c_ref: (W, W_out)  o_ref: (Bc, H_out, W_out)
    r = r_ref[...]
    c = c_ref[...]
    for b in range(bc):                            # static unroll, 2-D dots only
        z = jnp.dot(x_ref[b].astype(cdtype), c,
                    preferred_element_type=jnp.float32).astype(cdtype)
        o_ref[b] = jnp.dot(r, z,
                           preferred_element_type=jnp.float32).astype(o_ref.dtype)


# ---------------------------------------------------------------------------
# Host-side helpers
# ---------------------------------------------------------------------------
def _out_hw(H, W, size, scale_factor):
    if size is not None:
        if isinstance(size, int):
            return int(size), int(size)
        return int(size[0]), int(size[1])
    if isinstance(scale_factor, (int, float)):
        sh = sw = float(scale_factor)
    else:
        sh, sw = float(scale_factor[0]), float(scale_factor[1])
    return int(math.floor(H * sh)), int(math.floor(W * sw))


def _col_selector_np(W, W_out, dtype):
    # C[k, j] = 1 iff k == (j * W) // W_out   (nearest source-index rule)
    # TODO(synk): PyTorch computes floor(j * W / W_out) in float; the exact integer
    # rule used here can differ by one source pixel in rare large-size edge cases.
    src = (np.arange(W_out, dtype=np.int64) * W) // W_out
    sel = np.arange(W, dtype=np.int64)[:, None] == src[None, :]
    return np.asarray(sel, dtype=np.dtype(dtype))


def _row_selector_np(H, H_out, dtype):
    src = (np.arange(H_out, dtype=np.int64) * H) // H_out
    sel = src[:, None] == np.arange(H, dtype=np.int64)[None, :]
    return np.asarray(sel, dtype=np.dtype(dtype))


def _pick_block(nc, rows_per_plane, per_plane_bytes, fixed_bytes, budget,
                sublane_mult, two_cores, max_block=None):
    """Largest channel block (planes / grid step) fitting the VMEM budget."""
    avail = budget - fixed_bytes
    if avail <= 0 or per_plane_bytes <= 0:
        return None
    b_max = min(nc, avail // per_plane_bytes)
    if max_block is not None:
        b_max = min(b_max, max_block)
    if b_max < 1:
        return None

    def candidates(mult):
        return [b for b in range(int(b_max), 0, -1)
                if (b * rows_per_plane) % mult == 0 or b == nc]

    cands = candidates(sublane_mult) or candidates(8)
    if not cands:
        return None
    if two_cores:
        # Prefer an even number of grid steps so both v7x TensorCores stay busy.
        even = [b for b in cands if _cdiv(nc, b) % 2 == 0]
        if even:
            return even[0]
    return cands[0]


# ---------------------------------------------------------------------------
# Public wrapper
# ---------------------------------------------------------------------------
def interpolate_nearest(x, size=None, scale_factor=None):
    """Pallas equivalent of F.interpolate(x, size, scale_factor, mode='nearest')."""
    N, Cc, H, W = x.shape
    H_out, W_out = _out_hw(H, W, size, scale_factor)
    NC = N * Cc
    floating = jnp.issubdtype(x.dtype, jnp.floating)
    # TODO(synk): integer inputs route through the f32 MXU path; values with
    # |v| >= 2**24 would not round-trip exactly (PyTorch gathers ints bit-exactly).
    # TODO(synk): the one-hot selector matmul turns a single Inf/NaN in a source row
    # into NaNs across the whole upsampled row; a gather path would be needed if
    # Inf/NaN inputs matter.
    cdtype = x.dtype if floating else jnp.float32
    in_item = jnp.dtype(x.dtype).itemsize
    c_item = jnp.dtype(cdtype).itemsize
    sublane_mult = 8 * max(1, 4 // in_item)      # 8 f32/i32, 16 bf16/f16, 32 i8

    block_budget, vmem_limit, two_cores = _budgets()

    if H_out % H == 0:
        # Fast path: row replication folded into the (lane-dense) output width.
        s_h = H_out // H
        NW = s_h * W_out
        # Factor s_h out of the matmul only when the per-copy stores stay
        # lane-aligned; otherwise use the proven pre-tiled-selector matmul.
        factored = (s_h == 1) or (W_out % 128 == 0)
        sel_cols = W_out if factored else NW
        fixed = 2 * W * sel_cols * c_item                 # selector (double-buffered)
        per_plane = (2 * H * W * in_item                  # input tile, 2 buffers
                     + 2 * H * NW * in_item               # output tile, 2 buffers
                     + H * sel_cols * 4                   # f32 matmul result
                     + H * NW * in_item)                  # store temp
        B = _pick_block(NC, H, per_plane, fixed, block_budget,
                        sublane_mult, two_cores)
        if B is not None:
            Bm = B * H
            steps = _cdiv(NC, B)                          # B need not divide NC
            if factored:
                sel = _col_selector_np(W, W_out, cdtype)
                kern = functools.partial(_fast_kernel_factored, s_h=s_h,
                                         w_out=W_out, cdtype=cdtype)
            else:
                # TODO(synk): NW (or W_out) not a multiple of 128 → masked vst
                # partial stores for very small feature maps.
                sel = np.tile(_col_selector_np(W, W_out, cdtype), (1, s_h))
                kern = functools.partial(_fast_kernel_tiled, cdtype=cdtype)
            x2 = x.reshape(NC * H, W)
            cost = pl.CostEstimate(
                flops=2 * NC * H * W * sel_cols,
                transcendentals=0,
                bytes_accessed=(NC * H * W * in_item
                                + NC * H_out * W_out * in_item
                                + W * sel_cols * c_item))
            out2 = pl.pallas_call(
                kern,
                out_shape=jax.ShapeDtypeStruct((NC * H, NW), x.dtype),
                grid=(steps,),
                in_specs=[
                    pl.BlockSpec((Bm, W), lambda i: (i, 0)),
                    pl.BlockSpec((W, sel_cols), lambda i: (0, 0)),  # fetched once
                ],
                out_specs=pl.BlockSpec((Bm, NW), lambda i: (i, 0)),
                compiler_params=pltpu.CompilerParams(
                    dimension_semantics=("parallel",),
                    vmem_limit_bytes=vmem_limit),
                cost_estimate=cost,
            )(x2, jnp.asarray(sel))
            # (NC*H, s_h*W_out) is row-major identical to (N, C, H_out, W_out).
            return out2.reshape(N, Cc, H_out, W_out)

    # General fallback (non-integer row scale, or planes too large to block):
    # plane-blocked two-selector matmul, selectors hoisted & fetched once.
    R = _row_selector_np(H, H_out, cdtype)
    C = _col_selector_np(W, W_out, cdtype)
    fixed = 2 * (H_out * H + W * W_out) * c_item
    per_plane = (2 * H * W * in_item
                 + 2 * H_out * W_out * in_item
                 + H * W_out * (4 + c_item)
                 + H_out * W_out * 4)
    Bc = _pick_block(NC, 1, per_plane, fixed, block_budget, 1, two_cores,
                     max_block=16) or 1
    steps = _cdiv(NC, Bc)
    xf = x.reshape(NC, H, W)
    cost = pl.CostEstimate(
        flops=2 * NC * (H * W * W_out + H_out * H * W_out),
        transcendentals=0,
        bytes_accessed=(NC * H * W * in_item
                        + NC * H_out * W_out * in_item
                        + (H_out * H + W * W_out) * c_item))
    out = pl.pallas_call(
        functools.partial(_general_kernel, bc=Bc, cdtype=cdtype),
        out_shape=jax.ShapeDtypeStruct((NC, H_out, W_out), x.dtype),
        grid=(steps,),
        in_specs=[
            pl.BlockSpec((Bc, H, W), lambda i: (i, 0, 0)),
            pl.BlockSpec((H_out, H), lambda i: (0, 0)),   # fetched once
            pl.BlockSpec((W, W_out), lambda i: (0, 0)),   # fetched once
        ],
        out_specs=pl.BlockSpec((Bc, H_out, W_out), lambda i: (i, 0, 0)),
        compiler_params=pltpu.CompilerParams(
            dimension_semantics=("parallel",),
            vmem_limit_bytes=vmem_limit),
        cost_estimate=cost,
    )(xf, jnp.asarray(R), jnp.asarray(C))
    return out.reshape(N, Cc, H_out, W_out)


class Interpolate:
    """JAX/Pallas mirror of the PyTorch Interpolate module (mode='nearest')."""

    def __init__(self, size=None, scale_factor=None, mode="nearest",
                 align_corners=False):
        # TODO(synk): only mode='nearest' (the module's default) is implemented;
        # bilinear/bicubic/area modes are not covered by this kernel.
        assert mode == "nearest", "only 'nearest' is implemented"
        self.size = size
        self.scale_factor = scale_factor
        self.mode = mode
        self.align_corners = align_corners

    def __call__(self, x):
        return interpolate_nearest(x, size=self.size,
                                   scale_factor=self.scale_factor)


if __name__ == "__main__":
    key = jax.random.PRNGKey(0)
    N, C, H, W = 2, 4, 16, 16
    x = jax.random.normal(key, (N, C, H, W), dtype=jnp.float32)

    # --- fast path: integer scale factor (how PASD uses this module) ---
    module = Interpolate(scale_factor=2, mode="nearest")
    out = jax.block_until_ready(module(x))
    H_out, W_out = 2 * H, 2 * W
    src_h = (jnp.arange(H_out) * H) // H_out
    src_w = (jnp.arange(W_out) * W) // W_out
    ref = x[:, :, src_h, :][:, :, :, src_w]
    assert out.shape == (N, C, H_out, W_out), out.shape
    assert out.dtype == x.dtype
    assert jnp.array_equal(out, ref), "fast-path mismatch vs nearest reference"

    # --- general fallback: arbitrary (non-integer-scale) output size ---
    module2 = Interpolate(size=(24, 40), mode="nearest")
    out2 = jax.block_until_ready(module2(x))
    src_h2 = (jnp.arange(24) * H) // 24
    src_w2 = (jnp.arange(40) * W) // 40
    ref2 = x[:, :, src_h2, :][:, :, :, src_w2]
    assert out2.shape == (N, C, 24, 40), out2.shape
    assert out2.dtype == x.dtype
    assert jnp.array_equal(out2, ref2), "fallback mismatch vs nearest reference"

    # --- awkward channel count (NC not nicely divisible): still fast path ---
    x3 = jax.random.normal(jax.random.PRNGKey(1), (1, 3, 16, 16), dtype=jnp.float32)
    out3 = jax.block_until_ready(Interpolate(scale_factor=2)(x3))
    ref3 = x3[:, :, src_h, :][:, :, :, src_w]
    assert jnp.array_equal(out3, ref3), "odd-NC mismatch vs nearest reference"

    print("KERNEL_OK")
</pallas_src>

<mosaic_0001>
module attributes {stable_mosaic.version = 11 : i64} {
  func.func @_fast_kernel_tiled(%arg0: i32, %arg1: memref<112x16xf32, #tpu.memory_space<vmem>>, %arg2: memref<16x64xf32, #tpu.memory_space<vmem>>, %arg3: memref<112x64xf32, #tpu.memory_space<vmem>>) attributes {dimension_semantics = [#tpu.dimension_semantics<parallel>], iteration_bounds = array<i64: 2>, scalar_prefetch = 0 : i64, scratch_operands = 0 : i64, tpu.core_type = #tpu.core_type<tc>, window_params = [{transform_indices = @transform_0, window_bounds = array<i64: 112, 16>}, {pipeline_mode = #tpu.pipeline_mode<synchronous>, transform_indices = @transform_1, window_bounds = array<i64: 16, 64>}, {transform_indices = @transform_2, window_bounds = array<i64: 112, 64>}]} {
    %c0 = arith.constant 0 : index
    %c0_0 = arith.constant 0 : index
    %0 = vector.load %arg1[%c0, %c0_0] : memref<112x16xf32, #tpu.memory_space<vmem>>, vector<112x16xf32>
    %c0_1 = arith.constant 0 : index
    %c0_2 = arith.constant 0 : index
    %1 = vector.load %arg2[%c0_1, %c0_2] : memref<16x64xf32, #tpu.memory_space<vmem>>, vector<16x64xf32>
    %cst = arith.constant dense<0.000000e+00> : vector<112x64xf32>
    %2 = tpu.matmul %0, %1, %cst {dimension_numbers = #tpu.dot_dimension_numbers<[1], [0], [0], [1], [0, 0, 1, 1], [], []>} : vector<112x16xf32>, vector<16x64xf32>, vector<112x64xf32> -> vector<112x64xf32>
    %c0_3 = arith.constant 0 : index
    %c0_4 = arith.constant 0 : index
    %3 = vector.load %arg3[%c0_3, %c0_4] : memref<112x64xf32, #tpu.memory_space<vmem>>, vector<112x64xf32>
    tpu.vector_store %arg3[%c0_3, %c0_4], %2 {strides = array<i32>} : memref<112x64xf32, #tpu.memory_space<vmem>>, vector<112x64xf32>,
    return
  }
  func.func @transform_0(%arg0: i32) -> (i32, i32) {
    %c0_i32 = arith.constant 0 : i32
    %c0_i32_0 = arith.constant 0 : i32
    return %arg0, %c0_i32 : i32, i32
  }
  func.func @transform_1(%arg0: i32) -> (i32, i32) {
    %c0_i32 = arith.constant 0 : i32
    %c0_i32_0 = arith.constant 0 : i32
    %c0_i32_1 = arith.constant 0 : i32
    return %c0_i32, %c0_i32_0 : i32, i32
  }
  func.func @transform_2(%arg0: i32) -> (i32, i32) {
    %c0_i32 = arith.constant 0 : i32
    %c0_i32_0 = arith.constant 0 : i32
    return %arg0, %c0_i32 : i32, i32
  }
}

</mosaic_0001>

<llo_original>
// kernel: tpu_custom_call.1
$region0: #{tpu_custom_call.1}
  #allocation0 [shape = 'u32[]', space=smem, size = 0x4, offset = 0x4, fixed_abs, tag = 'smem constant byte address 0x4 - core index']
  #allocation1 [shape = 'u32[144,128]{1,0:T(1,128)}', space=vmem, size = 0x12000, scoped, tag = 'internal scratch']
  %s0 = inlined_call_operand.vmem [shape: f32[128,16], index: 0, kind: input, shape index: {}]
  %s1 = inlined_call_operand.vmem [shape: f32[16,64], index: 1, kind: input, shape index: {}]
  %s2 = inlined_call_operand.vmem [shape: f32[128,64], index: 2, kind: output, shape index: {}]
  %s3 = sld [smem:[#allocation0]]
  $region89: #{tpu_custom_call.1} parent=0
    _
  %s5 = ssub.s32 1, %s3
  %s6 = scalar_select 0, %s5, %s3
  $region1: #{tpu_custom_call.1} parent=0
    #allocation2 [shape = 'u8[114688]{0}', space=vmem, size = 0x1c000, scoped, tag = 'output window, operand 0']
    loop: start=0, step=1, limit=4
    $region2: #{tpu_custom_call.1} parent=1 // loop_pre_header
      _
    $region3: #{tpu_custom_call.1} parent=1 // loop_header
      %s8 = sphi 0, %s12
      %p9 = scmp.ge.s32.totalorder %s8, 4
      %s18 = sphi 0, %s20
      %s21 = sphi 0, %s18
      %s22 = sphi 0, %s21
      %s38 = sphi 0, %s22
      %s42 = sphi 0, %s42
      %s44 = sphi 0, %s42
      %s45 = sphi 0, %s44
      %s59 = sphi 0, %s45
      %s65 = sphi 0, %s67
      %s68 = sphi 0, %s65
      %s69 = sphi 0, %s68
      %s85 = sphi 0, %s69
    $region4: #{tpu_custom_call.1} parent=1 // loop_header_branch
      %11 = sbr.rel (%p9) target = $region8
    $region5: #{tpu_custom_call.1} parent=1 // loop_body
      %s13 = ssub.s32 %s8, 1
      %s14 = ssub.s32 %s8, 2
      %s15 = sadd.s32 %s8, 1
      %s16 = ssub.s32 %s8, %s15
      %p17 = scmp.eq.s32.totalorder %s16, 0
      %s19 = sadd.s32 %s18, 1
      %s20 = scalar_select %p17, %s18, %s19
      %p23 = pneg %p17
      %p24 = scmp.eq.s32.totalorder %s8, 1
      %p25 = por %p23, %p24
      %p26 = scmp.ne.s32.totalorder %s18, %s21
      %p27 = scmp.eq.s32.totalorder %s8, 0
      %p28 = por %p26, %p27
      %p29 = scmp.ne.s32.totalorder %s18, %s21
      %p30 = scmp.eq.s32.totalorder %s13, 1
      %p31 = por %p29, %p30
      %p32 = scmp.ne.s32.totalorder %s21, %s22
      %p33 = scmp.eq.s32.totalorder %s13, 0
      %p34 = por %p32, %p33
      %p35 = scmp.ne.s32.totalorder %s21, %s22
      %p36 = scmp.eq.s32.totalorder %s14, 1
      %p37 = por %p35, %p36
      %p39 = scmp.ne.s32.totalorder %s22, %s38
      %p40 = scmp.eq.s32.totalorder %s14, 0
      %p41 = por %p39, %p40
      %s43 = sadd.s32 %s42, 1
      %p46 = scmp.eq.s32.totalorder %s8, 1
      %p47 = scmp.ne.s32.totalorder %s42, %s44
      %p48 = scmp.eq.s32.totalorder %s8, 0
      %p49 = por %p47, %p48
      %p50 = scmp.ne.s32.totalorder %s42, %s44
      %p51 = scmp.eq.s32.totalorder %s13, 1
      %p52 = por %p50, %p51
      %p53 = scmp.ne.s32.totalorder %s44, %s45
      %p54 = scmp.eq.s32.totalorder %s13, 0
      %p55 = por %p53, %p54
      %p56 = scmp.ne.s32.totalorder %s44, %s45
      %p57 = scmp.eq.s32.totalorder %s14, 1
      %p58 = por %p56, %p57
      %p60 = scmp.ne.s32.totalorder %s45, %s59
      %p61 = scmp.eq.s32.totalorder %s14, 0
      %p62 = por %p60, %p61
      %s63 = ssub.s32 %s8, %s15
      %p64 = scmp.eq.s32.totalorder %s63, 0
      %s66 = sadd.s32 %s65, 1
      %s67 = scalar_select %p64, %s65, %s66
      %p70 = pneg %p64
      %p71 = scmp.eq.s32.totalorder %s8, 1
      %p72 = por %p70, %p71
      %p73 = scmp.ne.s32.totalorder %s65, %s68
      %p74 = scmp.eq.s32.totalorder %s8, 0
      %p75 = por %p73, %p74
      %p76 = scmp.ne.s32.totalorder %s65, %s68
      %p77 = scmp.eq.s32.totalorder %s13, 1
      %p78 = por %p76, %p77
      %p79 = scmp.ne.s32.totalorder %s68, %s69
      %p80 = scmp.eq.s32.totalorder %s13, 0
      %p81 = por %p79, %p80
      %p82 = scmp.ne.s32.totalorder %s68, %s69
      %p83 = scmp.eq.s32.totalorder %s14, 1
      %p84 = por %p82, %p83
      %p86 = scmp.ne.s32.totalorder %s69, %s85
      %p87 = scmp.eq.s32.totalorder %s14, 0
      %p88 = por %p86, %p87
      %p89 = scmp.le.s32.totalorder 1, %s8
      %p90 = scmp.lt.s32.totalorder %s8, 3
      %p91 = pnand %p89, %p90
      %p92 = pneg %p91
      // Predicated region
      $region9: #{tpu_custom_call.1} parent=5 // pred_check
        _
      $region10: #{tpu_custom_call.1} parent=5 // pred_check_branch
        %94 = sbr.rel (%p91) target = $region12
      $region11: #{tpu_custom_call.1} parent=5 // pred_region
        %s95 = ssub.s32 %s8, 1
        // Predicated region
        $region13: #{tpu_custom_call.1} parent=11 // pred_check
          %p96 = pneg %p55
        $region14: #{tpu_custom_call.1} parent=11 // pred_check_branch
          %98 = sbr.rel (%p96) target = $region16
        $region15: #{tpu_custom_call.1} parent=11 // pred_region
          _
        $region16: #{tpu_custom_call.1} parent=11 // pred_fallthru
          _
      $region12: #{tpu_custom_call.1} parent=5 // pred_fallthru
        _
      %p99 = scmp.lt.s32.totalorder %s8, 2
      // Predicated region
      $region17: #{tpu_custom_call.1} parent=5 // pred_check
        %p100 = pneg %p99
      $region18: #{tpu_custom_call.1} parent=5 // pred_check_branch
        %102 = sbr.rel (%p100) target = $region20
      $region19: #{tpu_custom_call.1} parent=5 // pred_region
        // Predicated region
        $region21: #{tpu_custom_call.1} parent=19 // pred_check
          %p103 = pneg %p28
        $region22: #{tpu_custom_call.1} parent=19 // pred_check_branch
          %105 = sbr.rel (%p103) target = $region24
        $region23: #{tpu_custom_call.1} parent=19 // pred_region
          %s106 = smul.u32 14, %s8
          %s107 = ssub.s32 16, %s106
          %p108 = scmp.lt.s32.totalorder %s107, 14
          %s109 = scalar_select %p108, %s107, 14
          %s110 = smul.u32 128, %s109
          %p111 = scmp.lt.s32.totalorder %s106, 15
          %s112 = scalar_select %p111, %s106, 15
          %s113 = smul.addr %s112, 8
          %s114 = scalar_lea.vmem %s0, %s113
          %s115 = smul.u32 14, %s8
          %s116 = ssub.s32 16, %s115
          %p117 = scmp.lt.s32.totalorder %s116, 14
          %s118 = scalar_select %p117, %s116, 14
          %s119 = smul.u32 128, %s118
        $region24: #{tpu_custom_call.1} parent=19 // pred_fallthru
          _
      $region20: #{tpu_custom_call.1} parent=5 // pred_fallthru
        _
      %p120 = scmp.le.s32.totalorder 1, %s8
      %p121 = scmp.lt.s32.totalorder %s8, 3
      %p122 = pnand %p120, %p121
      %p123 = pneg %p122
      // Predicated region
      $region25: #{tpu_custom_call.1} parent=5 // pred_check
        _
      $region26: #{tpu_custom_call.1} parent=5 // pred_check_branch
        %125 = sbr.rel (%p122) target = $region28
      $region27: #{tpu_custom_call.1} parent=5 // pred_region
        %s126 = ssub.s32 %s8, 1
        %s127 = smul.u32 14, %s13
        %s128 = ssub.s32 16, %s127
        %p129 = scmp.lt.s32.totalorder %s128, 14
        %s130 = scalar_select %p129, %s128, 14
        %s131 = smul.u32 128, %s130
        %p132 = scmp.lt.s32.totalorder %s127, 15
        %s133 = scalar_select %p132, %s127, 15
        %s134 = smul.addr %s133, 8
        %s135 = scalar_lea.vmem %s0, %s134
        %p136 = pneg %p34
        %p137 = pneg %p31
        %p138 = pneg %p55
        %p139 = pneg %p52
        %p140 = pneg %p81
        %p141 = pneg %p78
        %s142 = sand.u32 %s68, 1
        %s143 = sand.u32 %s68, 1
        %s144 = smul.addr %s143, 112
        %s145 = scalar_lea.vmem [#allocation2], %s144
        %s146 = smul.u32 14, %s13
        %s147 = ssub.s32 16, %s146
        %p148 = scmp.lt.s32.totalorder %s147, 14
        %s149 = scalar_select %p148, %s147, 14
        %s150 = smul.u32 128, %s149
        %p151 = scmp.lt.s32.totalorder %s146, 15
        %s152 = scalar_select %p151, %s146, 15
        %s153 = smul.addr %s152, 8
        %s154 = scalar_lea.vmem %s0, %s153
        %s155 = smul.u32 14, %s13
        %s156 = ssub.s32 16, %s155
        %p157 = scmp.lt.s32.totalorder %s156, 14
        %s158 = scalar_select %p157, %s156, 14
        %s159 = smul.u32 128, %s158
        %s160 = smul.u32 14, %s13
        %s161 = ssub.s32 16, %s160
        %p162 = scmp.lt.s32.totalorder %s161, 14
        %s163 = scalar_select %p162, %s161, 14
        %s164 = smul.u32 128, %s163
        %v165 = vld [vmem:[%s154] sm:$0xff]
        %v166 = vld [vmem:[%s154 + $0x8] sm:$0xff]
        %v167 = vld [vmem:[%s154 + $0x10] sm:$0xff]
        %v168 = vld [vmem:[%s154 + $0x18] sm:$0xff]
        %v169 = vld [vmem:[%s154 + $0x20] sm:$0xff]
        %v170 = vld [vmem:[%s154 + $0x28] sm:$0xff]
        %v171 = vld [vmem:[%s154 + $0x30] sm:$0xff]
        %v172 = vld [vmem:[%s154 + $0x38] sm:$0xff]
        %v173 = vld [vmem:[%s154 + $0x40] sm:$0xff]
        %v174 = vld [vmem:[%s154 + $0x48] sm:$0xff]
        %v175 = vld [vmem:[%s154 + $0x50] sm:$0xff]
        %v176 = vld [vmem:[%s154 + $0x58] sm:$0xff]
        %v177 = vld [vmem:[%s154 + $0x60] sm:$0xff]
        %v178 = vld [vmem:[%s154 + $0x68] sm:$0xff]
        %v179 = vld [vmem:[%s1] sm:$0xff]
        %v180 = vld [vmem:[%s1 + $0x8] sm:$0xff]
        %vm181 = vcmask 130048
        %v183 = vsel %vm181, %v165, 0
        %v186 = vsel %vm181, %v166, 0
        %v189 = vsel %vm181, %v167, 0
        %v192 = vsel %vm181, %v168, 0
        %v195 = vsel %vm181, %v169, 0
        %v198 = vsel %vm181, %v170, 0
        %v201 = vsel %vm181, %v171, 0
        %v204 = vsel %vm181, %v172, 0
        %v207 = vsel %vm181, %v173, 0
        %v210 = vsel %vm181, %v174, 0
        %v213 = vsel %vm181, %v175, 0
        %v216 = vsel %vm181, %v176, 0
        %v219 = vsel %vm181, %v177, 0
        %v222 = vsel %vm181, %v178, 0
        %224 = vmatprep.subr.mxu0 0.0
        %225 = vmatpush1.msra.mxu0 0.0
        %226 = vmatprep.subr.mxu0 0.0
        %227 = vmatpush1.msra.mxu0 0.0
        %228 = vmatprep.subr.mxu0 0.0
        %229 = vmatpush1.msra.mxu0 0.0
        %230 = vmatprep.subr.mxu0 0.0
        %231 = vmatpush1.msra.mxu0 0.0
        %232 = vmatprep.subr.mxu0 0.0
        %233 = vmatpush1.msra.mxu0 0.0
        %234 = vmatprep.subr.mxu0 0.0
        %235 = vmatpush1.msra.mxu0 0.0
        %236 = vmatprep.subr.mxu0 0.0
        %237 = vmatpush1.msra.mxu0 0.0
        %238 = vmatprep.subr.mxu0 0.0
        %239 = vmatpush1.msra.mxu0 0.0
        %240 = vmatprep.subr.mxu0 0.0
        %241 = vmatpush1.msra.mxu0 0.0
        %242 = vmatprep.subr.mxu0 0.0
        %243 = vmatpush1.msra.mxu0 0.0
        %244 = vmatprep.subr.mxu0 0.0
        %245 = vmatpush1.msra.mxu0 0.0
        %246 = vmatprep.subr.mxu0 0.0
        %247 = vmatpush1.msra.mxu0 0.0
        %248 = vmatprep.subr.mxu0 0.0
        %249 = vmatpush1.msra.mxu0 0.0
        %250 = vmatprep.subr.mxu0 0.0
        %251 = vmatpush1.msra.mxu0 0.0
        %252 = vmatprep.subr.mxu0 0.0
        %253 = vmatpush1.msra.mxu0 %v180
        %254 = vmatprep.subr.mxu0 0.0
        %255 = vmatpush1.msra.mxu0 %v179
        %256 = vmatprep.subr.mxu0 0.0
        %257 = vmatpush2.msra.mxu0 0.0
        %258 = vmatprep.subr.mxu0 0.0
        %259 = vmatpush2.msra.mxu0 0.0
        %260 = vmatprep.subr.mxu0 0.0
        %261 = vmatpush2.msra.mxu0 0.0
        %262 = vmatprep.subr.mxu0 0.0
        %263 = vmatpush2.msra.mxu0 0.0
        %264 = vmatprep.subr.mxu0 0.0
        %265 = vmatpush2.msra.mxu0 0.0
        %266 = vmatprep.subr.mxu0 0.0
        %267 = vmatpush2.msra.mxu0 0.0
        %268 = vmatprep.subr.mxu0 0.0
        %269 = vmatpush2.msra.mxu0 0.0
        %270 = vmatprep.subr.mxu0 0.0
        %271 = vmatpush2.msra.mxu0 0.0
        %272 = vmatprep.subr.mxu0 0.0
        %273 = vmatpush2.msra.mxu0 0.0
        %274 = vmatprep.subr.mxu0 0.0
        %275 = vmatpush2.msra.mxu0 0.0
        %276 = vmatprep.subr.mxu0 0.0
        %277 = vmatpush2.msra.mxu0 0.0
        %278 = vmatprep.subr.mxu0 0.0
        %279 = vmatpush2.msra.mxu0 0.0
        %280 = vmatprep.subr.mxu0 0.0
        %281 = vmatpush2.msra.mxu0 0.0
        %282 = vmatprep.subr.mxu0 0.0
        %283 = vmatpush2.msra.mxu0 0.0
        %284 = vmatprep.subr.mxu0 0.0
        %285 = vmatpush2.msra.mxu0 0.0
        %286 = vmatprep.subr.mxu0 0.0
        %287 = vmatpush2.msra.mxu0 0.0
        %288 = vmatprep.mubr.f32.mxu0 0.0
        %289 = vmatmul.mubr.f32.gmra.mxu0 %v183
        %v290 = vpop.f32.mrf.mxu0
        %v291 = vadd.f32 0.0, %v290
        %v292 = vpop.f32.mrf.mxu0
        %293 = vmatprep.mubr.f32.mxu0 0.0
        %294 = vmatmul.mubr.f32.gmra.mxu0 %v186
        %v295 = vpop.f32.mrf.mxu0
        %v296 = vadd.f32 0.0, %v295
        %v297 = vpop.f32.mrf.mxu0
        %298 = vmatprep.mubr.f32.mxu0 0.0
        %299 = vmatmul.mubr.f32.gmra.mxu0 %v189
        %v300 = vpop.f32.mrf.mxu0
        %v301 = vadd.f32 0.0, %v300
        %v302 = vpop.f32.mrf.mxu0
        %303 = vmatprep.mubr.f32.mxu0 0.0
        %304 = vmatmul.mubr.f32.gmra.mxu0 %v192
        %v305 = vpop.f32.mrf.mxu0
        %v306 = vadd.f32 0.0, %v305
        %v307 = vpop.f32.mrf.mxu0
        %308 = vmatprep.mubr.f32.mxu0 0.0
        %309 = vmatmul.mubr.f32.gmra.mxu0 %v195
        %v310 = vpop.f32.mrf.mxu0
        %v311 = vadd.f32 0.0, %v310
        %v312 = vpop.f32.mrf.mxu0
        %313 = vmatprep.mubr.f32.mxu0 0.0
        %314 = vmatmul.mubr.f32.gmra.mxu0 %v198
        %v315 = vpop.f32.mrf.mxu0
        %v316 = vadd.f32 0.0, %v315
        %v317 = vpop.f32.mrf.mxu0
        %318 = vmatprep.mubr.f32.mxu0 0.0
        %319 = vmatmul.mubr.f32.gmra.mxu0 %v201
        %v320 = vpop.f32.mrf.mxu0
        %v321 = vadd.f32 0.0, %v320
        %v322 = vpop.f32.mrf.mxu0
        %323 = vmatprep.mubr.f32.mxu0 0.0
        %324 = vmatmul.mubr.f32.gmra.mxu0 %v204
        %v325 = vpop.f32.mrf.mxu0
        %v326 = vadd.f32 0.0, %v325
        %v327 = vpop.f32.mrf.mxu0
        %328 = vmatprep.mubr.f32.mxu0 0.0
        %329 = vmatmul.mubr.f32.gmra.mxu0 %v207
        %v330 = vpop.f32.mrf.mxu0
        %v331 = vadd.f32 0.0, %v330
        %v332 = vpop.f32.mrf.mxu0
        %333 = vmatprep.mubr.f32.mxu0 0.0
        %334 = vmatmul.mubr.f32.gmra.mxu0 %v210
        %v335 = vpop.f32.mrf.mxu0
        %v336 = vadd.f32 0.0, %v335
        %v337 = vpop.f32.mrf.mxu0
        %338 = vmatprep.mubr.f32.mxu0 0.0
        %339 = vmatmul.mubr.f32.gmra.mxu0 %v213
        %v340 = vpop.f32.mrf.mxu0
        %v341 = vadd.f32 0.0, %v340
        %v342 = vpop.f32.mrf.mxu0
        %343 = vmatprep.mubr.f32.mxu0 0.0
        %344 = vmatmul.mubr.f32.gmra.mxu0 %v216
        %v345 = vpop.f32.mrf.mxu0
        %v346 = vadd.f32 0.0, %v345
        %v347 = vpop.f32.mrf.mxu0
        %348 = vmatprep.mubr.f32.mxu0 0.0
        %349 = vmatmul.mubr.f32.gmra.mxu0 %v219
        %v350 = vpop.f32.mrf.mxu0
        %v351 = vadd.f32 0.0, %v350
        %v352 = vpop.f32.mrf.mxu0
        %353 = vmatprep.mubr.f32.mxu0 0.0
        %354 = vmatmul.mubr.f32.gmra.mxu0 %v222
        %v355 = vpop.f32.mrf.mxu0
        %v356 = vadd.f32 0.0, %v355
        %v357 = vpop.f32.mrf.mxu0
        %358 = vdwg.mxu0
        %vm359 = vcmask 523264
        %360 = vst.msk [vmem:[%s145] sm:$0xff] %vm359, %v291
        %361 = vst.msk [vmem:[%s145 + $0x8] sm:$0xff] %vm359, %v296
        %362 = vst.msk [vmem:[%s145 + $0x10] sm:$0xff] %vm359, %v301
        %363 = vst.msk [vmem:[%s145 + $0x18] sm:$0xff] %vm359, %v306
        %364 = vst.msk [vmem:[%s145 + $0x20] sm:$0xff] %vm359, %v311
        %365 = vst.msk [vmem:[%s145 + $0x28] sm:$0xff] %vm359, %v316
        %366 = vst.msk [vmem:[%s145 + $0x30] sm:$0xff] %vm359, %v321
        %367 = vst.msk [vmem:[%s145 + $0x38] sm:$0xff] %vm359, %v326
        %368 = vst.msk [vmem:[%s145 + $0x40] sm:$0xff] %vm359, %v331
        %369 = vst.msk [vmem:[%s145 + $0x48] sm:$0xff] %vm359, %v336
        %370 = vst.msk [vmem:[%s145 + $0x50] sm:$0xff] %vm359, %v341
        %371 = vst.msk [vmem:[%s145 + $0x58] sm:$0xff] %vm359, %v346
        %372 = vst.msk [vmem:[%s145 + $0x60] sm:$0xff] %vm359, %v351
        %373 = vst.msk [vmem:[%s145 + $0x68] sm:$0xff] %vm359, %v356
        %s374 = sand.u32 %s68, 1
        %s375 = sand.u32 %s68, 1
        %s376 = smul.addr %s375, 112
        %s377 = scalar_lea.vmem [#allocation2], %s376
        // Predicated region
        $region29: #{tpu_custom_call.1} parent=27 // pred_check
          %p378 = pneg %p78
        $region30: #{tpu_custom_call.1} parent=27 // pred_check_branch
          %380 = sbr.rel (%p378) target = $region32
        $region31: #{tpu_custom_call.1} parent=27 // pred_region
          %s381 = smul.u32 14, %s13
          %s382 = ssub.s32 16, %s381
          %p383 = scmp.lt.s32.totalorder %s382, 14
          %s384 = scalar_select %p383, %s382, 14
          %s385 = smul.u32 128, %s384
          %p386 = scmp.ne.s32.totalorder 0, %s385
          %s387 = smul.addr %s381, 8
          %s388 = scalar_lea.vmem %s2, %s387
          // Predicated region
          $region33: #{tpu_custom_call.1} parent=31 // pred_check
            %p389 = pneg %p386
          $region34: #{tpu_custom_call.1} parent=31 // pred_check_branch
            %391 = sbr.rel (%p389) target = $region36
          $region35: #{tpu_custom_call.1} parent=31 // pred_region
            // Predicated region
            $region37: #{tpu_custom_call.1} parent=35 // pred_check
              _
            $region38: #{tpu_custom_call.1} parent=35 // pred_check_branch
              %393 = sbr.rel (0) target = $region40
            $region39: #{tpu_custom_call.1} parent=35 // pred_region
              // Predicated region
              $region59: #{tpu_custom_call.1} parent=39 // pred_check
                _
              $region60: #{tpu_custom_call.1} parent=39 // pred_check_branch
                %470 = sbr.rel (0) target = $region62
              $region61: #{tpu_custom_call.1} parent=39 // pred_region
                %s471 = sdiv.u32.pop %s384, 14
                %s472 = srem.u32.pop %s384, 14
                // While loop
                $region63: #{tpu_custom_call.1} parent=61 // loop_pre_header
                  _
                $region64: #{tpu_custom_call.1} parent=61 // loop_header
                  %s474 = sphi 0, %s476
                  %p475 = scmp.ge.s32.totalorder %s474, %s471
                  %s479 = sphi 0, %s512
                  %s480 = sphi %s377, %s515
                  %s481 = sphi %s388, %s516
                $region65: #{tpu_custom_call.1} parent=61 // loop_header_branch
                  %478 = sbr.rel (%p475) target = $region69
                $region66: #{tpu_custom_call.1} parent=61 // loop_body
                  %v482 = vld [vmem:[%s480] sm:$0xff]
                  %483 = vst [vmem:[%s481] sm:$0xff] %v482
                  %v484 = vld [vmem:[%s480 + $0x8] sm:$0xff]
                  %485 = vst [vmem:[%s481 + $0x8] sm:$0xff] %v484
                  %v486 = vld [vmem:[%s480 + $0x10] sm:$0xff]
                  %487 = vst [vmem:[%s481 + $0x10] sm:$0xff] %v486
                  %v488 = vld [vmem:[%s480 + $0x18] sm:$0xff]
                  %489 = vst [vmem:[%s481 + $0x18] sm:$0xff] %v488
                  %v490 = vld [vmem:[%s480 + $0x20] sm:$0xff]
                  %491 = vst [vmem:[%s481 + $0x20] sm:$0xff] %v490
                  %v492 = vld [vmem:[%s480 + $0x28] sm:$0xff]
                  %493 = vst [vmem:[%s481 + $0x28] sm:$0xff] %v492
                  %v494 = vld [vmem:[%s480 + $0x30] sm:$0xff]
                  %495 = vst [vmem:[%s481 + $0x30] sm:$0xff] %v494
                  %v496 = vld [vmem:[%s480 + $0x38] sm:$0xff]
                  %497 = vst [vmem:[%s481 + $0x38] sm:$0xff] %v496
                  %v498 = vld [vmem:[%s480 + $0x40] sm:$0xff]
                  %499 = vst [vmem:[%s481 + $0x40] sm:$0xff] %v498
                  %v500 = vld [vmem:[%s480 + $0x48] sm:$0xff]
                  %501 = vst [vmem:[%s481 + $0x48] sm:$0xff] %v500
                  %v502 = vld [vmem:[%s480 + $0x50] sm:$0xff]
                  %503 = vst [vmem:[%s481 + $0x50] sm:$0xff] %v502
                  %v504 = vld [vmem:[%s480 + $0x58] sm:$0xff]
                  %505 = vst [vmem:[%s481 + $0x58] sm:$0xff] %v504
                  %v506 = vld [vmem:[%s480 + $0x60] sm:$0xff]
                  %507 = vst [vmem:[%s481 + $0x60] sm:$0xff] %v506
                  %v508 = vld [vmem:[%s480 + $0x68] sm:$0xff]
                  %509 = vst [vmem:[%s481 + $0x68] sm:$0xff] %v508
                  %s510 = sadd.s32 1, %s479
                  %p511 = scmp.ge.s32.totalorder %s510, %s471
                  %s512 = scalar_select %p511, 0, %s510
                  %s513 = smul.u32 %s512, 112
                  %s514 = smul.u32 %s512, 112
                  %s515 = scalar_lea.vmem %s377, %s513 [#allocation2]
                  %s516 = scalar_lea.vmem %s388, %s514
                $region67: #{tpu_custom_call.1} parent=61 // loop_footer
                  %s476 = sadd.s32 %s474, 1
                $region68: #{tpu_custom_call.1} parent=61 // loop_footer_branch
                  %473 = sbr.rel target = $region64
                $region69: #{tpu_custom_call.1} parent=61 // loop_exit
                  _
                %s517 = sdiv.u32.pop %s384, 14
                %s518 = srem.u32.pop %s384, 14
                %s519 = smul.u32 %s517, 14
                %s520 = smul.u32 8, %s519
                %s521 = scalar_lea.vmem %s377, %s520 [#allocation2]
                %s522 = smul.u32 8, %s519
                %s523 = scalar_lea.vmem %s388, %s522
                // While loop
                $region70: #{tpu_custom_call.1} parent=61 // loop_pre_header
                  _
                $region71: #{tpu_custom_call.1} parent=61 // loop_header
                  %s525 = sphi 0, %s527
                  %p526 = scmp.ge.s32.totalorder %s525, %s518
                  %s530 = sphi 0, %s537
                  %s531 = sphi %s521, %s540
                  %s532 = sphi %s523, %s541
                $region72: #{tpu_custom_call.1} parent=61 // loop_header_branch
                  %529 = sbr.rel (%p526) target = $region76
                $region73: #{tpu_custom_call.1} parent=61 // loop_body
                  %v533 = vld [vmem:[%s531] sm:$0xff]
                  %534 = vst [vmem:[%s532] sm:$0xff] %v533
                  %s535 = sadd.s32 1, %s530
                  %p536 = scmp.ge.s32.totalorder %s535, %s518
                  %s537 = scalar_select %p536, 0, %s535
                  %s538 = smul.u32 %s537, 8
                  %s539 = smul.u32 %s537, 8
                  %s540 = scalar_lea.vmem %s521, %s538 [#allocation2]
                  %s541 = scalar_lea.vmem %s523, %s539
                $region74: #{tpu_custom_call.1} parent=61 // loop_footer
                  %s527 = sadd.s32 %s525, 1
                $region75: #{tpu_custom_call.1} parent=61 // loop_footer_branch
                  %524 = sbr.rel target = $region71
                $region76: #{tpu_custom_call.1} parent=61 // loop_exit
                  _
              $region62: #{tpu_custom_call.1} parent=39 // pred_fallthru
                _
              // Predicated region
              $region77: #{tpu_custom_call.1} parent=39 // pred_check
                _
              $region78: #{tpu_custom_call.1} parent=39 // pred_check_branch
                %543 = sbr.rel target = $region80
              $region79: #{tpu_custom_call.1} parent=39 // pred_region
                _
              $region80: #{tpu_custom_call.1} parent=39 // pred_fallthru
                _
            $region40: #{tpu_custom_call.1} parent=35 // pred_fallthru
              _
            // Predicated region
            $region41: #{tpu_custom_call.1} parent=35 // pred_check
              _
            $region42: #{tpu_custom_call.1} parent=35 // pred_check_branch
              %395 = sbr.rel target = $region44
            $region43: #{tpu_custom_call.1} parent=35 // pred_region
              %s397 = ssub.s32 256, 1
              %s398 = sdiv.u32.pop %s384, 14
              %s399 = srem.u32.pop %s384, 14
              // While loop
              $region45: #{tpu_custom_call.1} parent=43 // loop_pre_header
                _
              $region46: #{tpu_custom_call.1} parent=43 // loop_header
                %s401 = sphi 0, %s403
                %p402 = scmp.ge.s32.totalorder %s401, %s398
                %s406 = sphi 0, %s439
                %s407 = sphi %s377, %s442
                %s408 = sphi %s388, %s443
              $region47: #{tpu_custom_call.1} parent=43 // loop_header_branch
                %405 = sbr.rel (%p402) target = $region51
              $region48: #{tpu_custom_call.1} parent=43 // loop_body
                %v409 = vld [vmem:[%s407] sm:%s397]
                %410 = vst [vmem:[%s408] sm:%s397] %v409
                %v411 = vld [vmem:[%s407 + $0x8] sm:%s397]
                %412 = vst [vmem:[%s408 + $0x8] sm:%s397] %v411
                %v413 = vld [vmem:[%s407 + $0x10] sm:%s397]
                %414 = vst [vmem:[%s408 + $0x10] sm:%s397] %v413
                %v415 = vld [vmem:[%s407 + $0x18] sm:%s397]
                %416 = vst [vmem:[%s408 + $0x18] sm:%s397] %v415
                %v417 = vld [vmem:[%s407 + $0x20] sm:%s397]
                %418 = vst [vmem:[%s408 + $0x20] sm:%s397] %v417
                %v419 = vld [vmem:[%s407 + $0x28] sm:%s397]
                %420 = vst [vmem:[%s408 + $0x28] sm:%s397] %v419
                %v421 = vld [vmem:[%s407 + $0x30] sm:%s397]
                %422 = vst [vmem:[%s408 + $0x30] sm:%s397] %v421
                %v423 = vld [vmem:[%s407 + $0x38] sm:%s397]
                %424 = vst [vmem:[%s408 + $0x38] sm:%s397] %v423
                %v425 = vld [vmem:[%s407 + $0x40] sm:%s397]
                %426 = vst [vmem:[%s408 + $0x40] sm:%s397] %v425
                %v427 = vld [vmem:[%s407 + $0x48] sm:%s397]
                %428 = vst [vmem:[%s408 + $0x48] sm:%s397] %v427
                %v429 = vld [vmem:[%s407 + $0x50] sm:%s397]
                %430 = vst [vmem:[%s408 + $0x50] sm:%s397] %v429
                %v431 = vld [vmem:[%s407 + $0x58] sm:%s397]
                %432 = vst [vmem:[%s408 + $0x58] sm:%s397] %v431
                %v433 = vld [vmem:[%s407 + $0x60] sm:%s397]
                %434 = vst [vmem:[%s408 + $0x60] sm:%s397] %v433
                %v435 = vld [vmem:[%s407 + $0x68] sm:%s397]
                %436 = vst [vmem:[%s408 + $0x68] sm:%s397] %v435
                %s437 = sadd.s32 1, %s406
                %p438 = scmp.ge.s32.totalorder %s437, %s398
                %s439 = scalar_select %p438, 0, %s437
                %s440 = smul.u32 %s439, 112
                %s441 = smul.u32 %s439, 112
                %s442 = scalar_lea.vmem %s377, %s440 [#allocation2]
                %s443 = scalar_lea.vmem %s388, %s441
              $region49: #{tpu_custom_call.1} parent=43 // loop_footer
                %s403 = sadd.s32 %s401, 1
              $region50: #{tpu_custom_call.1} parent=43 // loop_footer_branch
                %400 = sbr.rel target = $region46
              $region51: #{tpu_custom_call.1} parent=43 // loop_exit
                _
              %s444 = sdiv.u32.pop %s384, 14
              %s445 = srem.u32.pop %s384, 14
              %s446 = smul.u32 %s444, 14
              %s447 = smul.u32 8, %s446
              %s448 = scalar_lea.vmem %s377, %s447 [#allocation2]
              %s449 = smul.u32 8, %s446
              %s450 = scalar_lea.vmem %s388, %s449
              // While loop
              $region52: #{tpu_custom_call.1} parent=43 // loop_pre_header
                _
              $region53: #{tpu_custom_call.1} parent=43 // loop_header
                %s452 = sphi 0, %s454
                %p453 = scmp.ge.s32.totalorder %s452, %s445
                %s457 = sphi 0, %s464
                %s458 = sphi %s448, %s467
                %s459 = sphi %s450, %s468
              $region54: #{tpu_custom_call.1} parent=43 // loop_header_branch
                %456 = sbr.rel (%p453) target = $region58
              $region55: #{tpu_custom_call.1} parent=43 // loop_body
                %v460 = vld [vmem:[%s458] sm:%s397]
                %461 = vst [vmem:[%s459] sm:%s397] %v460
                %s462 = sadd.s32 1, %s457
                %p463 = scmp.ge.s32.totalorder %s462, %s445
                %s464 = scalar_select %p463, 0, %s462
                %s465 = smul.u32 %s464, 8
                %s466 = smul.u32 %s464, 8
                %s467 = scalar_lea.vmem %s448, %s465 [#allocation2]
                %s468 = scalar_lea.vmem %s450, %s466
              $region56: #{tpu_custom_call.1} parent=43 // loop_footer
                %s454 = sadd.s32 %s452, 1
              $region57: #{tpu_custom_call.1} parent=43 // loop_footer_branch
                %451 = sbr.rel target = $region53
              $region58: #{tpu_custom_call.1} parent=43 // loop_exit
                _
            $region44: #{tpu_custom_call.1} parent=35 // pred_fallthru
              _
          $region36: #{tpu_custom_call.1} parent=31 // pred_fallthru
            _
          %544 = vnop
        $region32: #{tpu_custom_call.1} parent=27 // pred_fallthru
          _
      $region28: #{tpu_custom_call.1} parent=5 // pred_fallthru
        _
      %p545 = scmp.le.s32.totalorder 2, %s8
      // Predicated region
      $region81: #{tpu_custom_call.1} parent=5 // pred_check
        %p546 = pneg %p545
      $region82: #{tpu_custom_call.1} parent=5 // pred_check_branch
        %548 = sbr.rel (%p546) target = $region84
      $region83: #{tpu_custom_call.1} parent=5 // pred_region
        %s549 = ssub.s32 %s8, 2
        // Predicated region
        $region85: #{tpu_custom_call.1} parent=83 // pred_check
          %p550 = pneg %p84
        $region86: #{tpu_custom_call.1} parent=83 // pred_check_branch
          %552 = sbr.rel (%p550) target = $region88
        $region87: #{tpu_custom_call.1} parent=83 // pred_region
          %s553 = sand.u32 %s69, 1
          %s554 = sand.u32 %s69, 1
          %s555 = smul.addr %s554, 112
          %s556 = scalar_lea.vmem [#allocation2], %s555
        $region88: #{tpu_custom_call.1} parent=83 // pred_fallthru
          _
      $region84: #{tpu_custom_call.1} parent=5 // pred_fallthru
        _
    $region6: #{tpu_custom_call.1} parent=1 // loop_footer
      %s12 = sadd.s32 1, %s8
    $region7: #{tpu_custom_call.1} parent=1 // loop_footer_branch
      %7 = sbr.rel target = $region3
    $region8: #{tpu_custom_call.1} parent=1 // loop_exit
      _

</llo_original>
